<compile_context>
chip_gen: v5e
topology: v5e:2x2
jax: 0.10.0
libtpu: 0.0.40
codegen_flags: <defaults>
</compile_context>

<pallas_src>
import functools
import math

import jax
import jax.numpy as jnp
from jax.experimental import pallas as pl
from jax.experimental.pallas import tpu as pltpu


def _vmem_budget_bytes():
    """Per-generation VMEM budget: ~85% of capacity, capped at 100 MiB."""
    try:
        cap = int(pltpu.get_tpu_info().vmem_capacity_bytes)
    except Exception:
        cap = 64 * 1024 * 1024          # conservative (v7x-sized) fallback
    return min(int(cap * 0.85), 100 * 1024 * 1024)


def _row_tile(n_rows, n_cols, itemsize, target_bytes):
    """Row-tile size: multiple of the native sublane packing, or full extent."""
    align = 8 if itemsize >= 4 else (16 if itemsize == 2 else 32)
    tr = target_bytes // max(1, n_cols * itemsize)
    tr = max(align, (tr // align) * align)
    return min(tr, n_rows)


def _fold_reduce(v, feat, cols):
    """Sum the LF folded feature groups of a (1, cols) vector.

    cols == LF*feat with LF a power of two, so log2(LF) roll+add steps suffice;
    afterwards every lane c holds the total for feature (c mod feat), i.e. the
    result is already in the folded/tiled layout needed for scale/shift."""
    s = feat
    while s < cols:
        v = v + pltpu.roll(v, shift=s, axis=1)
        s *= 2
    return v


# --------------------------------------------------------------------------
# Resident fast path: whole folded array lives in VMEM (1 read + 1 write).
# --------------------------------------------------------------------------
def _resident_kernel(x_ref, gamma_ref, beta_ref, o_ref, *,
                     n_samples, feat, cols, eps):
    x = x_ref[...].astype(jnp.float32)
    col_sum = jnp.sum(x, axis=0, keepdims=True)
    col_sq = jnp.sum(x * x, axis=0, keepdims=True)
    tot_sum = _fold_reduce(col_sum, feat, cols)
    tot_sq = _fold_reduce(col_sq, feat, cols)
    inv_n = 1.0 / float(n_samples)
    mean = tot_sum * inv_n
    var = jnp.maximum(tot_sq * inv_n - mean * mean, 0.0)   # biased variance
    inv_std = jax.lax.rsqrt(var + eps)
    scale = gamma_ref[...] * inv_std
    shift = beta_ref[...] - mean * scale
    o_ref[...] = (x * scale + shift).astype(o_ref.dtype)


# --------------------------------------------------------------------------
# Fused tiled path: stats (phase 0) + finalize + apply (phase 1) in one call.
# --------------------------------------------------------------------------
def _fused_kernel(x_ref, gamma_ref, beta_ref, o_ref,
                  sum_ref, sq_ref, scale_ref, shift_ref, *,
                  n_rows, tile_rows, n_tiles, n_samples, feat, cols, eps):
    phase = pl.program_id(0)
    i = pl.program_id(1)

    def _accumulate(xv):
        sum_ref[...] += jnp.sum(xv, axis=0, keepdims=True)
        sq_ref[...] += jnp.sum(xv * xv, axis=0, keepdims=True)

    # ---- phase 0, step 0: zero the resident f32 accumulators ----
    @pl.when((phase == 0) & (i == 0))
    def _():
        sum_ref[...] = jnp.zeros_like(sum_ref)
        sq_ref[...] = jnp.zeros_like(sq_ref)

    # ---- phase 0: accumulate per-column sum / sum of squares ----
    if n_rows % tile_rows != 0:
        last = n_tiles - 1

        # Only the last tile has padded rows: keep the iota/compare/select off
        # the hot tiles.
        @pl.when((phase == 0) & (i == last))
        def _():
            x = x_ref[...].astype(jnp.float32)
            row_ids = i * tile_rows + jax.lax.broadcasted_iota(
                jnp.int32, (tile_rows, 1), 0)
            _accumulate(jnp.where(row_ids < n_rows, x, 0.0))

        @pl.when((phase == 0) & (i != last))
        def _():
            _accumulate(x_ref[...].astype(jnp.float32))
    else:
        @pl.when(phase == 0)
        def _():
            _accumulate(x_ref[...].astype(jnp.float32))

    # ---- phase 1, step 0: finalize per-feature scale / shift in-kernel ----
    @pl.when((phase == 1) & (i == 0))
    def _():
        tot_sum = _fold_reduce(sum_ref[...], feat, cols)
        tot_sq = _fold_reduce(sq_ref[...], feat, cols)
        inv_n = 1.0 / float(n_samples)
        mean = tot_sum * inv_n
        var = jnp.maximum(tot_sq * inv_n - mean * mean, 0.0)   # biased variance
        inv_std = jax.lax.rsqrt(var + eps)
        scale = gamma_ref[...] * inv_std
        scale_ref[...] = scale
        shift_ref[...] = beta_ref[...] - mean * scale

    # ---- phase 1: y = x * scale + shift ----
    # Padded rows of a partial last tile compute garbage, but Pallas drops
    # out-of-bounds rows on the output writeback, so no masking is needed.
    @pl.when(phase == 1)
    def _():
        x = x_ref[...].astype(jnp.float32)
        o_ref[...] = (x * scale_ref[...] + shift_ref[...]).astype(o_ref.dtype)


# --------------------------------------------------------------------------
# Wrapper
# --------------------------------------------------------------------------
def reshape_batch_norm(x, gamma, beta, *, eps: float = 1e-5,
                       target_tile_bytes=None, resident_vmem_bytes=None):
    """x: (batch, num, feat); gamma/beta: (feat,). Returns (batch, num, feat)."""
    assert x.ndim == 3
    B, N, F = x.shape
    rows = B * N
    itemsize = x.dtype.itemsize

    budget = _vmem_budget_bytes()
    if resident_vmem_bytes is None:
        resident_vmem_bytes = budget
    if target_tile_bytes is None:
        target_tile_bytes = min(8 * 1024 * 1024, budget // 6)

    # Lane-dense fold: (rows, F) -> (R, C) with C a multiple of 128 when the
    # row count allows it.  Pure row-major view, no data movement.
    lf = 1
    if F % 128 != 0:
        cand = 128 // math.gcd(F, 128)          # power of two
        if rows % cand == 0:
            lf = cand
    # TODO(synk): when rows % cand != 0 we fall back to lf=1 (masked stores for
    # F < 128); padding the folded row count would keep full-lane stores.
    R, C = rows // lf, F * lf
    x2 = x.reshape(R, C)

    gamma2 = jnp.tile(gamma.astype(jnp.float32), lf).reshape(1, C)
    beta2 = jnp.tile(beta.astype(jnp.float32), lf).reshape(1, C)

    # ---- Resident fast path: folded array (plus f32 temporaries) fits VMEM ----
    resident_need = R * C * (3 * 4 + 2 * itemsize)
    if resident_need <= resident_vmem_bytes:
        out2 = pl.pallas_call(
            functools.partial(_resident_kernel,
                              n_samples=rows, feat=F, cols=C, eps=eps),
            out_shape=jax.ShapeDtypeStruct((R, C), x.dtype),
            compiler_params=pltpu.CompilerParams(vmem_limit_bytes=budget),
            cost_estimate=pl.CostEstimate(
                flops=5 * R * C, transcendentals=C,
                bytes_accessed=int(2 * R * C * itemsize + 8 * C)),
        )(x2, gamma2, beta2)
        return out2.reshape(B, N, F)

    # ---- Fused tiled path: single pallas_call, two-phase grid ----
    tr = _row_tile(R, C, itemsize, target_tile_bytes)
    n_tiles = pl.cdiv(R, tr)

    out2 = pl.pallas_call(
        functools.partial(_fused_kernel,
                          n_rows=R, tile_rows=tr, n_tiles=n_tiles,
                          n_samples=rows, feat=F, cols=C, eps=eps),
        out_shape=jax.ShapeDtypeStruct((R, C), x.dtype),
        grid=(2, n_tiles),
        in_specs=[pl.BlockSpec((tr, C), lambda p, i: (i, 0)),
                  pl.BlockSpec((1, C), lambda p, i: (0, 0)),
                  pl.BlockSpec((1, C), lambda p, i: (0, 0))],
        # Pin the output to block 0 during the stats phase so each output block
        # stays resident until its single write in phase 1 (no garbage writeback).
        out_specs=pl.BlockSpec((tr, C), lambda p, i: (i * p, 0)),
        scratch_shapes=[pltpu.VMEM((1, C), jnp.float32),   # sum
                        pltpu.VMEM((1, C), jnp.float32),   # sum of squares
                        pltpu.VMEM((1, C), jnp.float32),   # scale
                        pltpu.VMEM((1, C), jnp.float32)],  # shift
        compiler_params=pltpu.CompilerParams(
            dimension_semantics=("arbitrary", "arbitrary"),
            vmem_limit_bytes=budget),
        cost_estimate=pl.CostEstimate(
            flops=5 * R * C, transcendentals=C,
            bytes_accessed=int(3 * R * C * itemsize + 8 * C)),
    )(x2, gamma2, beta2)

    return out2.reshape(B, N, F)


# --------------------------------------------------------------------------
# Reference + tests
# --------------------------------------------------------------------------
def _reference(x, gamma, beta, eps=1e-5):
    B, N, F = x.shape
    x2 = x.reshape(B * N, F).astype(jnp.float32)
    mean = jnp.mean(x2, axis=0, keepdims=True)
    var = jnp.mean((x2 - mean) ** 2, axis=0, keepdims=True)
    y = (x2 - mean) / jnp.sqrt(var + eps) * gamma + beta
    return y.reshape(B, N, F).astype(x.dtype)


def _run_case(key, batch, num, feat, atol, **kw):
    k_x, k_g, k_b = jax.random.split(key, 3)
    x = jax.random.normal(k_x, (batch, num, feat), dtype=jnp.float32)
    gamma = 1.0 + 0.1 * jax.random.normal(k_g, (feat,), dtype=jnp.float32)
    beta = 0.1 * jax.random.normal(k_b, (feat,), dtype=jnp.float32)

    fn = jax.jit(functools.partial(reshape_batch_norm, **kw))
    out = jax.block_until_ready(fn(x, gamma, beta))
    ref = _reference(x, gamma, beta)

    assert out.shape == (batch, num, feat)
    assert jnp.allclose(out, ref, atol=atol, rtol=atol), (
        f"mismatch vs reference at shape {(batch, num, feat)} ({kw})")


if __name__ == "__main__":
    key = jax.random.PRNGKey(0)
    ks = jax.random.split(key, 5)

    # Small shape consistent with the module (batch, num, feat): resident path,
    # lane-fold lf=4.
    _run_case(ks[0], batch=2, num=8, feat=32, atol=3e-5)
    # Medium shape: resident single-read path, lf=4, F not a multiple of 128.
    _run_case(ks[1], batch=4, num=1024, feat=160, atol=1e-4)
    # Same shape forced onto the fused two-phase tiled path with small tiles so
    # the multi-tile grid, partial-tile masking and in-kernel finalize all run.
    _run_case(ks[2], batch=4, num=1024, feat=160, atol=1e-4,
              resident_vmem_bytes=0, target_tile_bytes=256 * 1024)
    # Tiled path without lane-fold (feat already a multiple of 128).
    _run_case(ks[3], batch=2, num=512, feat=256, atol=1e-4,
              resident_vmem_bytes=0, target_tile_bytes=128 * 1024)
    # Fold bails out (rows not divisible by the fold factor): masked-store path.
    _run_case(ks[4], batch=3, num=7, feat=96, atol=3e-5)

    print("KERNEL_OK")
</pallas_src>

<mosaic_0001>
module attributes {stable_mosaic.version = 11 : i64} {
  func.func @_resident_kernel(%arg0: memref<4x128xf32, #tpu.memory_space<vmem>>, %arg1: memref<1x128xf32, #tpu.memory_space<vmem>>, %arg2: memref<1x128xf32, #tpu.memory_space<vmem>>, %arg3: memref<4x128xf32, #tpu.memory_space<vmem>>) attributes {dimension_semantics = [], scalar_prefetch = 0 : i64, scratch_operands = 0 : i64, tpu.core_type = #tpu.core_type<tc>} {
    %c0 = arith.constant 0 : index
    %c0_0 = arith.constant 0 : index
    %0 = vector.load %arg0[%c0, %c0_0] : memref<4x128xf32, #tpu.memory_space<vmem>>, vector<4x128xf32>
    %cst = arith.constant dense<0.000000e+00> : vector<128xf32>
    %1 = vector.multi_reduction <add>, %0, %cst [0] : vector<4x128xf32> to vector<128xf32>
    %2 = vector.shape_cast %1 : vector<128xf32> to vector<1x128xf32>
    %3 = arith.mulf %0, %0 : vector<4x128xf32>
    %cst_1 = arith.constant dense<0.000000e+00> : vector<128xf32>
    %4 = vector.multi_reduction <add>, %3, %cst_1 [0] : vector<4x128xf32> to vector<128xf32>
    %5 = vector.shape_cast %4 : vector<128xf32> to vector<1x128xf32>
    %c32_i32 = arith.constant 32 : i32
    %6 = tpu.dynamic_rotate %2 by %c32_i32 dim 1 : vector<1x128xf32>, i32 -> vector<1x128xf32>
    %7 = arith.addf %2, %6 : vector<1x128xf32>
    %c64_i32 = arith.constant 64 : i32
    %8 = tpu.dynamic_rotate %7 by %c64_i32 dim 1 : vector<1x128xf32>, i32 -> vector<1x128xf32>
    %9 = arith.addf %7, %8 : vector<1x128xf32>
    %c32_i32_2 = arith.constant 32 : i32
    %10 = tpu.dynamic_rotate %5 by %c32_i32_2 dim 1 : vector<1x128xf32>, i32 -> vector<1x128xf32>
    %11 = arith.addf %5, %10 : vector<1x128xf32>
    %c64_i32_3 = arith.constant 64 : i32
    %12 = tpu.dynamic_rotate %11 by %c64_i32_3 dim 1 : vector<1x128xf32>, i32 -> vector<1x128xf32>
    %13 = arith.addf %11, %12 : vector<1x128xf32>
    %cst_4 = arith.constant 6.250000e-02 : f32
    %14 = vector.broadcast %cst_4 : f32 to vector<1x128xf32>
    %15 = arith.mulf %9, %14 : vector<1x128xf32>
    %cst_5 = arith.constant 6.250000e-02 : f32
    %16 = vector.broadcast %cst_5 : f32 to vector<1x128xf32>
    %17 = arith.mulf %13, %16 : vector<1x128xf32>
    %18 = arith.mulf %15, %15 : vector<1x128xf32>
    %19 = arith.subf %17, %18 : vector<1x128xf32>
    %cst_6 = arith.constant 0.000000e+00 : f32
    %20 = vector.broadcast %cst_6 : f32 to vector<1x128xf32>
    %21 = arith.maximumf %19, %20 : vector<1x128xf32>
    %cst_7 = arith.constant 9.99999974E-6 : f32
    %22 = vector.broadcast %cst_7 : f32 to vector<1x128xf32>
    %23 = arith.addf %21, %22 : vector<1x128xf32>
    %24 = math.rsqrt %23 : vector<1x128xf32>
    %c0_8 = arith.constant 0 : index
    %c0_9 = arith.constant 0 : index
    %25 = vector.load %arg1[%c0_8, %c0_9] : memref<1x128xf32, #tpu.memory_space<vmem>>, vector<1x128xf32>
    %26 = arith.mulf %25, %24 : vector<1x128xf32>
    %c0_10 = arith.constant 0 : index
    %c0_11 = arith.constant 0 : index
    %27 = vector.load %arg2[%c0_10, %c0_11] : memref<1x128xf32, #tpu.memory_space<vmem>>, vector<1x128xf32>
    %28 = arith.mulf %15, %26 : vector<1x128xf32>
    %29 = arith.subf %27, %28 : vector<1x128xf32>
    %30 = vector.broadcast %26 : vector<1x128xf32> to vector<4x128xf32>
    %31 = arith.mulf %0, %30 : vector<4x128xf32>
    %32 = vector.broadcast %29 : vector<1x128xf32> to vector<4x128xf32>
    %33 = arith.addf %31, %32 : vector<4x128xf32>
    %c0_12 = arith.constant 0 : index
    %c0_13 = arith.constant 0 : index
    %34 = vector.load %arg3[%c0_12, %c0_13] : memref<4x128xf32, #tpu.memory_space<vmem>>, vector<4x128xf32>
    tpu.vector_store %arg3[%c0_12, %c0_13], %33 {strides = array<i32>} : memref<4x128xf32, #tpu.memory_space<vmem>>, vector<4x128xf32>,
    return
  }
}

</mosaic_0001>

<llo_original>
// kernel: tile.14
$region0: #{tile.14}
  %s0 = inlined_call_operand.vmem [shape: f32[4,32], index: 0, kind: input, shape index: {}]
  %s1 = inlined_call_operand.vmem [shape: f32[1,128], index: 1, kind: output, shape index: {}]
  $region1: #{tile.14} parent=0
    #allocation0 [shape = 'u8[4096]{0}', space=vmem, size = 0x1000, scoped, tag = 'scoped mem for output reshape']
    #allocation1 [shape = 'u8[4096]{0}', space=vmem, size = 0x1000, scoped, tag = 'scoped mem for input reshape']
    %s3 = ssub.s32 16, 1
    %v4 = vld [vmem:[%s0] sm:%s3]
    %5 = vst [vmem:[#allocation1] sm:%s3] %v4
    %v6 = vld [vmem:[#allocation1] sm:$0x1]
    %vm7 = vcmask 261120
    %8 = vst.msk [vmem:[#allocation0] sm:$0x1] %vm7, %v6
    %s9 = scalar_lea.vmem [#allocation1], 3
    %v10 = vld [vmem:[%s9] sm:$0x1]
    %11 = vrot.lane.b32.xlu0 %v10, 96
    %v12 = vpop.permute.xlu0 %11
    %vm13 = vcmask 1048320
    %14 = vst.msk [vmem:[#allocation0] sm:$0x1] %vm13, %v12
    %s15 = scalar_lea.vmem [#allocation1], 2
    %v16 = vld [vmem:[%s15] sm:$0x1]
    %17 = vrot.lane.b32.xlu0 %v16, 64
    %v18 = vpop.permute.xlu0 %17
    %vm19 = vcmask 785920
    %20 = vst.msk [vmem:[#allocation0] sm:$0x1] %vm19, %v18
    %s21 = scalar_lea.vmem [#allocation1], 1
    %v22 = vld [vmem:[%s21] sm:$0x1]
    %23 = vrot.lane.b32.xlu0 %v22, 32
    %v24 = vpop.permute.xlu0 %23
    %vm25 = vcmask 523520
    %26 = vst.msk [vmem:[#allocation0] sm:$0x1] %vm25, %v24
    %s28 = ssub.s32 2, 1
    %v29 = vld [vmem:[#allocation0] sm:%s28]
    %s31 = ssub.s32 2, 1
    %32 = vst [vmem:[%s1] sm:%s31] %v29

// kernel: tile.13
$region0: #{tile.13}
  #allocation0 [shape = 's32[1]{0}', space=sflag, size = 0x4, scoped, tag = 'scoped memory for tile.13']
  %s0 = inlined_call_operand.vmem [shape: f32[32], index: 0, kind: input, shape index: {}]
  %s1 = inlined_call_operand.vmem [shape: f32[4,32], index: 1, kind: output, shape index: {}]
  // Predicated region
  $region2: #{tile.13} parent=0 // pred_check
    _
  $region3: #{tile.13} parent=0 // pred_check_branch
    %3 = sbr.rel (0) target = $region5
  $region4: #{tile.13} parent=0 // pred_region
    _
  $region5: #{tile.13} parent=0 // pred_fallthru
    _
  %v4 = vld [vmem:[%s0] ss:$0 sm:$0xff]
  %5 = vst [vmem:[%s1] sm:$0xf] %v4

</llo_original>
